<compile_context>
chip_gen: v7x
topology: tpu7x:2x2x1
jax: 0.10.0
libtpu: 0.0.40
codegen_flags: <defaults>
</compile_context>

<pallas_src>
import functools

import jax
import jax.numpy as jnp
from jax.experimental import pallas as pl
from jax.experimental.pallas import tpu as pltpu


def _round_up(v, m):
    return ((v + m - 1) // m) * m


def gnn_pool_kernel(xw1_ref, a_ref, r_ref, b1_ref, part_ref, h_acc):
    """Grid (g, i, k): g = parallel row-tile group, i = row tile in group, k = contraction tile.

    Accumulates the per-group pooled hidden vector (post-ReLU, r-weighted) into part_ref.
    """
    i = pl.program_id(1)
    k = pl.program_id(2)

    @pl.when(jnp.logical_and(i == 0, k == 0))
    def _():
        part_ref[...] = jnp.zeros_like(part_ref)

    @pl.when(k == 0)
    def _():
        h_acc[...] = jnp.zeros_like(h_acc)

    # ---- GCNConv 1 (collapsed): pre-ReLU accumulate A_tile @ XW1_tile (bf16 MXU, f32 acc) ----
    h_acc[...] += jnp.dot(a_ref[...], xw1_ref[...], preferred_element_type=jnp.float32)

    @pl.when(k == pl.num_programs(2) - 1)
    def _():
        # bias + ReLU once per row tile (after the full contraction)
        h = jnp.maximum(h_acc[...] + b1_ref[...], 0.0)
        # ---- Dropout ----
        # TODO(synk): dropout(p=0.5) implemented as identity (eval / inference mode only).
        # ---- collapsed GCNConv 2 + node-mean: pooled partial += r_tile @ h ----
        # Padded rows give h = relu(b1) != 0 but their r entries are zero -> no contribution.
        part_ref[...] += jnp.dot(r_ref[...], h, preferred_element_type=jnp.float32)[None]


def gnn_head_kernel(part_ref, w2_ref, b2_ref, out_ref, *, cout):
    """Sum group partials, apply W2 + b2, masked log_softmax over the valid lanes."""
    pooled = jnp.sum(part_ref[...], axis=0)                                       # [1, Hp]
    m = jnp.dot(pooled, w2_ref[...], preferred_element_type=jnp.float32) + b2_ref[...]
    lane = jax.lax.broadcasted_iota(jnp.int32, m.shape, 1)
    valid = lane < cout
    mx = jnp.max(jnp.where(valid, m, -jnp.inf), axis=-1, keepdims=True)
    z = m - mx
    ez = jnp.where(valid, jnp.exp(z), 0.0)
    lse = jnp.log(jnp.sum(ez, axis=-1, keepdims=True))
    out_ref[...] = jnp.where(valid, z - lse, 0.0)


def gnn_forward(x, a_norm, w1, b1, w2, b2, *, max_row_tile=512, max_col_tile=1024,
                vmem_limit_bytes=32 * 1024 * 1024):
    """max_row_tile / max_col_tile must be multiples of 128 and max_col_tile % max_row_tile == 0.

    Defaults fit every generation (v5e 16 MiB scoped, v7x 64 MiB physical); on v6e (128 MiB
    VMEM) larger tiles (e.g. 1024 / 2048) with a larger vmem_limit_bytes reduce per-step
    overhead for big graphs.
    """
    assert max_row_tile % 128 == 0 and max_col_tile % 128 == 0
    assert max_col_tile % max_row_tile == 0

    n, cin = x.shape
    hid = w1.shape[1]
    cout = w2.shape[1]
    lane = 128

    h_pad = _round_up(hid, lane)
    c_pad = _round_up(cout, lane)

    # conv1 collapse: XW1 computed once in f32, fed to the MXU in bf16.
    xw1 = jnp.dot(x, w1)                                                          # [n, hid] f32

    # conv2 + mean collapse: r = column-mean of A_hat, exact in f32 (A_hat may be directed,
    # so the symmetric in-kernel row-sum shortcut is not used).
    r = jnp.sum(a_norm, axis=0, keepdims=True) / jnp.float32(n)                   # [1, n] f32

    # Node padding: multiple of 128 lanes, then multiples of the row/col tiles.
    n_pad = _round_up(n, lane)
    if n_pad > max_row_tile:
        tm = max_row_tile
        n_pad = _round_up(n_pad, tm)
    else:
        tm = n_pad
    if n_pad > max_col_tile:
        tk = max_col_tile
        n_pad = _round_up(n_pad, tk)      # stays a multiple of tm
    else:
        tk = n_pad                        # already a multiple of tm

    # Padded operands built directly in their kernel dtypes (no f32 padded copy of A).
    a_bf = jnp.zeros((n_pad, n_pad), jnp.bfloat16).at[:n, :n].set(a_norm.astype(jnp.bfloat16))
    xw1_bf = jnp.zeros((n_pad, h_pad), jnp.bfloat16).at[:n, :hid].set(xw1.astype(jnp.bfloat16))
    r_p = jnp.zeros((1, n_pad), jnp.float32).at[:, :n].set(r)
    b1p = jnp.zeros((1, h_pad), jnp.float32).at[:, :hid].set(b1.reshape(1, -1))
    w2p = jnp.zeros((h_pad, c_pad), jnp.float32).at[:hid, :cout].set(w2)
    b2p = jnp.zeros((1, c_pad), jnp.float32).at[:, :cout].set(b2.reshape(1, -1))

    n_row_tiles = n_pad // tm
    n_col_tiles = n_pad // tk
    groups = 2 if (n_row_tiles >= 2 and n_row_tiles % 2 == 0) else 1
    tiles_per_group = n_row_tiles // groups

    xw1_map = lambda g, i, k: (k, 0)
    a_map = lambda g, i, k: (g * tiles_per_group + i, k)
    r_map = lambda g, i, k: (0, g * tiles_per_group + i)
    b1_map = lambda g, i, k: (0, 0)
    out_map = lambda g, i, k: (g, 0, 0)

    partials = pl.pallas_call(
        gnn_pool_kernel,
        out_shape=jax.ShapeDtypeStruct((groups, 1, h_pad), jnp.float32),
        grid=(groups, tiles_per_group, n_col_tiles),
        in_specs=[
            pl.BlockSpec((tk, h_pad), xw1_map),   # XW1 contraction tile (bf16)
            pl.BlockSpec((tm, tk), a_map),        # A tile (bf16)
            pl.BlockSpec((1, tm), r_map),         # r slice matching the row tile
            pl.BlockSpec((1, h_pad), b1_map),     # b1 (lane-padded)
        ],
        out_specs=pl.BlockSpec((1, 1, h_pad), out_map),
        scratch_shapes=[pltpu.VMEM((tm, h_pad), jnp.float32)],  # pre-ReLU accumulator
        compiler_params=pltpu.CompilerParams(
            # g: independent row-tile groups (megacore on v7x); i, k carry accumulators.
            dimension_semantics=("parallel", "arbitrary", "arbitrary"),
            vmem_limit_bytes=vmem_limit_bytes),
    )(xw1_bf, a_bf, r_p, b1p)

    # Tiny finalize: sum partials, W2 + b2, masked log_softmax (single-step Pallas call).
    out = pl.pallas_call(
        functools.partial(gnn_head_kernel, cout=cout),
        out_shape=jax.ShapeDtypeStruct((1, c_pad), jnp.float32),
    )(partials, w2p, b2p)

    return out[0, :cout]   # matches torch.mean(dim=0) -> log_softmax(dim=-1)


def build_normalized_adjacency(edge_index, num_nodes):
    """Dense D^{-1/2}(A + I)D^{-1/2} from PyG-style edge_index [2, E].

    Duplicate edges scatter-add (PyG semantics) and self-loops are only added where missing.
    """
    src, dst = edge_index[0], edge_index[1]
    a = jnp.zeros((num_nodes, num_nodes), jnp.float32).at[dst, src].add(1.0)
    diag = jnp.diagonal(a)
    a = a + jnp.diag(jnp.where(diag > 0, 0.0, 1.0))      # add_remaining_self_loops(fill=1)
    deg = jnp.sum(a, axis=1)
    dinv = jnp.where(deg > 0, 1.0 / jnp.sqrt(deg), 0.0)
    return dinv[:, None] * a * dinv[None, :]


def ref_forward(x, a_norm, w1, b1, w2, b2):
    """Module-order reference: conv1 -> relu -> dropout(eval) -> conv2 -> mean -> log_softmax.

    A and XW1 are rounded to bf16 exactly as the kernel does, so the comparison isolates the
    (mathematically exact) reorder / collapse rewrites in the kernel.
    """
    a1 = a_norm.astype(jnp.bfloat16).astype(jnp.float32)
    xw1 = jnp.dot(x, w1).astype(jnp.bfloat16).astype(jnp.float32)
    h = a1 @ xw1 + b1
    h = jnp.maximum(h, 0.0)
    h2 = a_norm @ (h @ w2) + b2
    m = jnp.mean(h2, axis=0)
    return jax.nn.log_softmax(m, axis=-1)


if __name__ == "__main__":
    # Small shapes implied by the module: N nodes with in/hidden/out channels.
    num_nodes, in_channels, hidden_channels, out_channels = 16, 4, 32, 8
    num_edges = 40

    key = jax.random.PRNGKey(0)
    kx, ke, kw1, kw2, kb1, kb2 = jax.random.split(key, 6)

    # Node features + random directed edges (edge_index[0]=src, [1]=dst).
    x = jax.random.normal(kx, (num_nodes, in_channels), jnp.float32)
    edge_index = jax.random.randint(ke, (2, num_edges), 0, num_nodes, jnp.int32)

    # Deterministic Glorot-style parameter init (GCNConv: weight [Cin,Cout], bias [Cout]).
    def glorot(k, shape):
        limit = jnp.sqrt(6.0 / (shape[0] + shape[1]))
        return jax.random.uniform(k, shape, jnp.float32, -limit, limit)

    w1 = glorot(kw1, (in_channels, hidden_channels))
    b1 = 0.1 * jax.random.normal(kb1, (hidden_channels,), jnp.float32)
    w2 = glorot(kw2, (hidden_channels, out_channels))
    b2 = 0.1 * jax.random.normal(kb2, (out_channels,), jnp.float32)

    a_norm = build_normalized_adjacency(edge_index, num_nodes)

    # Jit the whole forward so wrapper prep (pad + bf16 cast + colmean of A) fuses into one pass.
    fwd = jax.jit(gnn_forward)
    out = fwd(x, a_norm, w1, b1, w2, b2)
    out = jax.block_until_ready(out)

    ref = ref_forward(x, a_norm, w1, b1, w2, b2)
    assert out.shape == (out_channels,)
    assert jnp.allclose(out, ref, atol=1e-4, rtol=1e-4), (out, ref)

    print("KERNEL_OK")
</pallas_src>

<mosaic_0001>
module attributes {stable_mosaic.version = 11 : i64} {
  func.func @gnn_pool_kernel(%arg0: i32, %arg1: i32, %arg2: i32, %arg3: memref<128x128xbf16, #tpu.memory_space<vmem>>, %arg4: memref<128x128xbf16, #tpu.memory_space<vmem>>, %arg5: memref<1x128xf32, #tpu.memory_space<vmem>>, %arg6: memref<1x128xf32, #tpu.memory_space<vmem>>, %arg7: memref<1x1x128xf32, #tpu.memory_space<vmem>>, %arg8: memref<128x128xf32, #tpu.memory_space<vmem>>) attributes {dimension_semantics = [#tpu.dimension_semantics<parallel>, #tpu.dimension_semantics<arbitrary>, #tpu.dimension_semantics<arbitrary>], iteration_bounds = array<i64: 1, 1, 1>, scalar_prefetch = 0 : i64, scratch_operands = 1 : i64, tpu.core_type = #tpu.core_type<tc>, window_params = [{transform_indices = @transform_0, window_bounds = array<i64: 128, 128>}, {transform_indices = @transform_1, window_bounds = array<i64: 128, 128>}, {transform_indices = @transform_2, window_bounds = array<i64: 1, 128>}, {pipeline_mode = #tpu.pipeline_mode<synchronous>, transform_indices = @transform_3, window_bounds = array<i64: 1, 128>}, {transform_indices = @transform_4, window_bounds = array<i64: 1, 1, 128>}]} {
    %c0_i32 = arith.constant 0 : i32
    %0 = arith.cmpi eq, %arg1, %c0_i32 : i32
    %c0_i32_0 = arith.constant 0 : i32
    %1 = arith.cmpi eq, %arg2, %c0_i32_0 : i32
    %2 = arith.andi %0, %1 : i1
    %3 = arith.extui %2 : i1 to i32
    %c0_i32_1 = arith.constant 0 : i32
    %4 = arith.cmpi ne, %3, %c0_i32_1 : i32
    scf.if %4 {
      %cst_13 = arith.constant 0.000000e+00 : f32
      %17 = vector.broadcast %cst_13 : f32 to vector<1x1x128xf32>
      %c0_14 = arith.constant 0 : index
      %c0_15 = arith.constant 0 : index
      %c0_16 = arith.constant 0 : index
      %18 = vector.load %arg7[%c0_14, %c0_15, %c0_16] : memref<1x1x128xf32, #tpu.memory_space<vmem>>, vector<1x1x128xf32>
      tpu.vector_store %arg7[%c0_14, %c0_15, %c0_16], %17 {strides = array<i32>} : memref<1x1x128xf32, #tpu.memory_space<vmem>>, vector<1x1x128xf32>,
    } else {
    }
    %c0_i32_2 = arith.constant 0 : i32
    %5 = arith.cmpi eq, %arg2, %c0_i32_2 : i32
    %6 = arith.extui %5 : i1 to i32
    %c0_i32_3 = arith.constant 0 : i32
    %7 = arith.cmpi ne, %6, %c0_i32_3 : i32
    scf.if %7 {
      %cst_13 = arith.constant 0.000000e+00 : f32
      %17 = vector.broadcast %cst_13 : f32 to vector<128x128xf32>
      %c0_14 = arith.constant 0 : index
      %c0_15 = arith.constant 0 : index
      %18 = vector.load %arg8[%c0_14, %c0_15] : memref<128x128xf32, #tpu.memory_space<vmem>>, vector<128x128xf32>
      tpu.vector_store %arg8[%c0_14, %c0_15], %17 {strides = array<i32>} : memref<128x128xf32, #tpu.memory_space<vmem>>, vector<128x128xf32>,
    } else {
    }
    %c0 = arith.constant 0 : index
    %c0_4 = arith.constant 0 : index
    %8 = vector.load %arg8[%c0, %c0_4] : memref<128x128xf32, #tpu.memory_space<vmem>>, vector<128x128xf32>
    %c0_5 = arith.constant 0 : index
    %c0_6 = arith.constant 0 : index
    %9 = vector.load %arg4[%c0_5, %c0_6] : memref<128x128xbf16, #tpu.memory_space<vmem>>, vector<128x128xbf16>
    %c0_7 = arith.constant 0 : index
    %c0_8 = arith.constant 0 : index
    %10 = vector.load %arg3[%c0_7, %c0_8] : memref<128x128xbf16, #tpu.memory_space<vmem>>, vector<128x128xbf16>
    %cst = arith.constant dense<0.000000e+00> : vector<128x128xf32>
    %11 = tpu.matmul %9, %10, %cst {dimension_numbers = #tpu.dot_dimension_numbers<[1], [0], [0], [1], [0, 0, 1, 1], [], []>} : vector<128x128xbf16>, vector<128x128xbf16>, vector<128x128xf32> -> vector<128x128xf32>
    %12 = arith.addf %8, %11 : vector<128x128xf32>
    %c0_9 = arith.constant 0 : index
    %c0_10 = arith.constant 0 : index
    %13 = vector.load %arg8[%c0_9, %c0_10] : memref<128x128xf32, #tpu.memory_space<vmem>>, vector<128x128xf32>
    tpu.vector_store %arg8[%c0_9, %c0_10], %12 {strides = array<i32>} : memref<128x128xf32, #tpu.memory_space<vmem>>, vector<128x128xf32>,
    %c0_i32_11 = arith.constant 0 : i32
    %14 = arith.cmpi eq, %arg2, %c0_i32_11 : i32
    %15 = arith.extui %14 : i1 to i32
    %c0_i32_12 = arith.constant 0 : i32
    %16 = arith.cmpi ne, %15, %c0_i32_12 : i32
    scf.if %16 {
      %c0_13 = arith.constant 0 : index
      %c0_14 = arith.constant 0 : index
      %17 = vector.load %arg8[%c0_13, %c0_14] : memref<128x128xf32, #tpu.memory_space<vmem>>, vector<128x128xf32>
      %c0_15 = arith.constant 0 : index
      %c0_16 = arith.constant 0 : index
      %18 = vector.load %arg6[%c0_15, %c0_16] : memref<1x128xf32, #tpu.memory_space<vmem>>, vector<1x128xf32>
      %19 = vector.broadcast %18 : vector<1x128xf32> to vector<128x128xf32>
      %20 = arith.addf %17, %19 : vector<128x128xf32>
      %cst_17 = arith.constant 0.000000e+00 : f32
      %21 = vector.broadcast %cst_17 : f32 to vector<128x128xf32>
      %22 = arith.maximumf %20, %21 : vector<128x128xf32>
      %c0_18 = arith.constant 0 : index
      %c0_19 = arith.constant 0 : index
      %c0_20 = arith.constant 0 : index
      %23 = vector.load %arg7[%c0_18, %c0_19, %c0_20] : memref<1x1x128xf32, #tpu.memory_space<vmem>>, vector<1x1x128xf32>
      %c0_21 = arith.constant 0 : index
      %c0_22 = arith.constant 0 : index
      %24 = vector.load %arg5[%c0_21, %c0_22] : memref<1x128xf32, #tpu.memory_space<vmem>>, vector<1x128xf32>
      %cst_23 = arith.constant dense<0.000000e+00> : vector<1x128xf32>
      %25 = tpu.matmul %24, %22, %cst_23 {dimension_numbers = #tpu.dot_dimension_numbers<[1], [0], [0], [1], [0, 0, 1, 1], [], []>} : vector<1x128xf32>, vector<128x128xf32>, vector<1x128xf32> -> vector<1x128xf32>
      %26 = vector.shape_cast %25 : vector<1x128xf32> to vector<1x1x128xf32>
      %27 = arith.addf %23, %26 : vector<1x1x128xf32>
      %c0_24 = arith.constant 0 : index
      %c0_25 = arith.constant 0 : index
      %c0_26 = arith.constant 0 : index
      %28 = vector.load %arg7[%c0_24, %c0_25, %c0_26] : memref<1x1x128xf32, #tpu.memory_space<vmem>>, vector<1x1x128xf32>
      tpu.vector_store %arg7[%c0_24, %c0_25, %c0_26], %27 {strides = array<i32>} : memref<1x1x128xf32, #tpu.memory_space<vmem>>, vector<1x1x128xf32>,
    } else {
    }
    return
  }
  func.func @transform_0(%arg0: i32, %arg1: i32, %arg2: i32) -> (i32, i32) {
    %c0_i32 = arith.constant 0 : i32
    %c0_i32_0 = arith.constant 0 : i32
    return %arg2, %c0_i32 : i32, i32
  }
  func.func @transform_1(%arg0: i32, %arg1: i32, %arg2: i32) -> (i32, i32) {
    %c1_i32 = arith.constant 1 : i32
    %0 = arith.muli %arg0, %c1_i32 : i32
    %1 = arith.addi %0, %arg1 : i32
    %c0_i32 = arith.constant 0 : i32
    return %1, %arg2 : i32, i32
  }
  func.func @transform_2(%arg0: i32, %arg1: i32, %arg2: i32) -> (i32, i32) {
    %c1_i32 = arith.constant 1 : i32
    %0 = arith.muli %arg0, %c1_i32 : i32
    %1 = arith.addi %0, %arg1 : i32
    %c0_i32 = arith.constant 0 : i32
    %c0_i32_0 = arith.constant 0 : i32
    return %c0_i32, %1 : i32, i32
  }
  func.func @transform_3(%arg0: i32, %arg1: i32, %arg2: i32) -> (i32, i32) {
    %c0_i32 = arith.constant 0 : i32
    %c0_i32_0 = arith.constant 0 : i32
    %c0_i32_1 = arith.constant 0 : i32
    return %c0_i32, %c0_i32_0 : i32, i32
  }
  func.func @transform_4(%arg0: i32, %arg1: i32, %arg2: i32) -> (i32, i32, i32) {
    %c0_i32 = arith.constant 0 : i32
    %c0_i32_0 = arith.constant 0 : i32
    %c0_i32_1 = arith.constant 0 : i32
    return %arg0, %c0_i32, %c0_i32_0 : i32, i32, i32
  }
}

module attributes {stable_mosaic.version = 11 : i64} {
  func.func @gnn_head_kernel(%arg0: memref<1x1x128xf32, #tpu.memory_space<vmem>>, %arg1: memref<128x128xf32, #tpu.memory_space<vmem>>, %arg2: memref<1x128xf32, #tpu.memory_space<vmem>>, %arg3: memref<1x128xf32, #tpu.memory_space<vmem>>) attributes {dimension_semantics = [], scalar_prefetch = 0 : i64, scratch_operands = 0 : i64, tpu.core_type = #tpu.core_type<tc>} {
    %c0 = arith.constant 0 : index
    %c0_0 = arith.constant 0 : index
    %c0_1 = arith.constant 0 : index
    %0 = vector.load %arg0[%c0, %c0_0, %c0_1] : memref<1x1x128xf32, #tpu.memory_space<vmem>>, vector<1x1x128xf32>
    %cst = arith.constant dense<0.000000e+00> : vector<1x128xf32>
    %1 = vector.multi_reduction <add>, %0, %cst [0] : vector<1x1x128xf32> to vector<1x128xf32>
    %c0_2 = arith.constant 0 : index
    %c0_3 = arith.constant 0 : index
    %2 = vector.load %arg1[%c0_2, %c0_3] : memref<128x128xf32, #tpu.memory_space<vmem>>, vector<128x128xf32>
    %cst_4 = arith.constant dense<0.000000e+00> : vector<1x128xf32>
    %3 = tpu.matmul %1, %2, %cst_4 {dimension_numbers = #tpu.dot_dimension_numbers<[1], [0], [0], [1], [0, 0, 1, 1], [], []>} : vector<1x128xf32>, vector<128x128xf32>, vector<1x128xf32> -> vector<1x128xf32>
    %c0_5 = arith.constant 0 : index
    %c0_6 = arith.constant 0 : index
    %4 = vector.load %arg2[%c0_5, %c0_6] : memref<1x128xf32, #tpu.memory_space<vmem>>, vector<1x128xf32>
    %5 = arith.addf %3, %4 : vector<1x128xf32>
    %6 = tpu.iota {dimensions = array<i32: 1>} : vector<1x128xi32>
    %c8_i32 = arith.constant 8 : i32
    %7 = vector.broadcast %c8_i32 : i32 to vector<1x128xi32>
    %8 = arith.cmpi slt, %6, %7 : vector<1x128xi32>
    %cst_7 = arith.constant 0xFF800000 : f32
    %9 = vector.broadcast %cst_7 : f32 to vector<1x128xf32>
    %10 = arith.select %8, %5, %9 : vector<1x128xi1>, vector<1x128xf32>
    %cst_8 = arith.constant dense<0xFF800000> : vector<1xf32>
    %11 = vector.multi_reduction <maximumf>, %10, %cst_8 [1] : vector<1x128xf32> to vector<1xf32>
    %12 = vector.shape_cast %11 : vector<1xf32> to vector<1x1xf32>
    %13 = vector.broadcast %12 : vector<1x1xf32> to vector<1x128xf32>
    %14 = arith.subf %5, %13 : vector<1x128xf32>
    %15 = math.exp %14 : vector<1x128xf32>
    %cst_9 = arith.constant 0.000000e+00 : f32
    %16 = vector.broadcast %cst_9 : f32 to vector<1x128xf32>
    %17 = arith.select %8, %15, %16 : vector<1x128xi1>, vector<1x128xf32>
    %cst_10 = arith.constant dense<0.000000e+00> : vector<1xf32>
    %18 = vector.multi_reduction <add>, %17, %cst_10 [1] : vector<1x128xf32> to vector<1xf32>
    %19 = vector.shape_cast %18 : vector<1xf32> to vector<1x1xf32>
    %20 = math.log %19 : vector<1x1xf32>
    %21 = vector.broadcast %20 : vector<1x1xf32> to vector<1x128xf32>
    %22 = arith.subf %14, %21 : vector<1x128xf32>
    %cst_11 = arith.constant 0.000000e+00 : f32
    %23 = vector.broadcast %cst_11 : f32 to vector<1x128xf32>
    %24 = arith.select %8, %22, %23 : vector<1x128xi1>, vector<1x128xf32>
    %c0_12 = arith.constant 0 : index
    %c0_13 = arith.constant 0 : index
    %25 = vector.load %arg3[%c0_12, %c0_13] : memref<1x128xf32, #tpu.memory_space<vmem>>, vector<1x128xf32>
    tpu.vector_store %arg3[%c0_12, %c0_13], %24 {strides = array<i32>} : memref<1x128xf32, #tpu.memory_space<vmem>>, vector<1x128xf32>,
    return
  }
}

</mosaic_0001>

<llo_original>
// kernel: gnn_forward.3
$region0: #{gnn_forward.3}
  #allocation0 [shape = 'u32[]', space=smem, size = 0x4, offset = 0x4, fixed_abs, tag = 'smem constant byte address 0x4 - core index']
  #allocation1 [shape = 'u32[144,128]{1,0:T(1,128)}', space=vmem, size = 0x12000, scoped, tag = 'internal scratch']
  %s0 = inlined_call_operand.vmem [shape: f32[1,1,128], index: 0, kind: input, shape index: {}]
  %s1 = inlined_call_operand.vmem [shape: f32[128,128], index: 1, kind: input, shape index: {}]
  %s2 = inlined_call_operand.vmem [shape: f32[1,128], index: 2, kind: input, shape index: {}]
  %s3 = inlined_call_operand.vmem [shape: f32[1,128], index: 3, kind: output, shape index: {}]
  %s4 = sld [smem:[#allocation0]]
  $region22: #{gnn_forward.3} parent=0
    _
  %s6 = ssub.s32 1, %s4
  %s7 = scalar_select 0, %s6, %s4
  // Predicated region
  $region2: #{gnn_forward.3} parent=0 // pred_check
    _
  $region3: #{gnn_forward.3} parent=0 // pred_check_branch
    %9 = sbr.rel (0) target = $region5
  $region4: #{gnn_forward.3} parent=0 // pred_region
    _
  $region5: #{gnn_forward.3} parent=0 // pred_fallthru
    _
  // Predicated region
  $region6: #{gnn_forward.3} parent=0 // pred_check
    _
  $region7: #{gnn_forward.3} parent=0 // pred_check_branch
    %11 = sbr.rel (0) target = $region9
  $region8: #{gnn_forward.3} parent=0 // pred_region
    _
  $region9: #{gnn_forward.3} parent=0 // pred_fallthru
    _
  // Predicated region
  $region10: #{gnn_forward.3} parent=0 // pred_check
    _
  $region11: #{gnn_forward.3} parent=0 // pred_check_branch
    %13 = sbr.rel (0) target = $region13
  $region12: #{gnn_forward.3} parent=0 // pred_region
    _
  $region13: #{gnn_forward.3} parent=0 // pred_fallthru
    _
  %v14 = vld [vmem:[%s0] sm:$0x1]
  %v15 = vadd.f32 %v14, 0.0
  %v16 = vld [vmem:[%s1] sm:$0xff]
  %v17 = vld [vmem:[%s1 + $0x8] sm:$0xff]
  %v18 = vld [vmem:[%s1 + $0x10] sm:$0xff]
  %v19 = vld [vmem:[%s1 + $0x18] sm:$0xff]
  %v20 = vld [vmem:[%s1 + $0x20] sm:$0xff]
  %v21 = vld [vmem:[%s1 + $0x28] sm:$0xff]
  %v22 = vld [vmem:[%s1 + $0x30] sm:$0xff]
  %v23 = vld [vmem:[%s1 + $0x38] sm:$0xff]
  %v24 = vld [vmem:[%s1 + $0x40] sm:$0xff]
  %v25 = vld [vmem:[%s1 + $0x48] sm:$0xff]
  %v26 = vld [vmem:[%s1 + $0x50] sm:$0xff]
  %v27 = vld [vmem:[%s1 + $0x58] sm:$0xff]
  %v28 = vld [vmem:[%s1 + $0x60] sm:$0xff]
  %v29 = vld [vmem:[%s1 + $0x68] sm:$0xff]
  %v30 = vld [vmem:[%s1 + $0x70] sm:$0xff]
  %v31 = vld [vmem:[%s1 + $0x78] sm:$0xff]
  %v32 = vld [vmem:[%s2] sm:$0x1]
  %33 = vmatprep.subr.mxu0 0.0
  %34 = vmatpush1.msra.mxu0 %v16
  %35 = vmatprep.subr.mxu0 0.0
  %36 = vmatpush1.msra.mxu0 %v17
  %37 = vmatprep.subr.mxu0 0.0
  %38 = vmatpush1.msra.mxu0 %v18
  %39 = vmatprep.subr.mxu0 0.0
  %40 = vmatpush1.msra.mxu0 %v19
  %41 = vmatprep.subr.mxu0 0.0
  %42 = vmatpush1.msra.mxu0 %v20
  %43 = vmatprep.subr.mxu0 0.0
  %44 = vmatpush1.msra.mxu0 %v21
  %45 = vmatprep.subr.mxu0 0.0
  %46 = vmatpush1.msra.mxu0 %v22
  %47 = vmatprep.subr.mxu0 0.0
  %48 = vmatpush1.msra.mxu0 %v23
  %49 = vmatprep.subr.mxu0 0.0
  %50 = vmatpush1.msra.mxu0 %v24
  %51 = vmatprep.subr.mxu0 0.0
  %52 = vmatpush1.msra.mxu0 %v25
  %53 = vmatprep.subr.mxu0 0.0
  %54 = vmatpush1.msra.mxu0 %v26
  %55 = vmatprep.subr.mxu0 0.0
  %56 = vmatpush1.msra.mxu0 %v27
  %57 = vmatprep.subr.mxu0 0.0
  %58 = vmatpush1.msra.mxu0 %v28
  %59 = vmatprep.subr.mxu0 0.0
  %60 = vmatpush1.msra.mxu0 %v29
  %61 = vmatprep.subr.mxu0 0.0
  %62 = vmatpush1.msra.mxu0 %v30
  %63 = vmatprep.subr.mxu0 0.0
  %64 = vmatpush1.msra.mxu0 %v31
  %65 = vmatprep.subr.mxu0 0.0
  %66 = vmatpush1.msra.mxu0 0.0
  %67 = vmatprep.subr.mxu0 0.0
  %68 = vmatpush1.msra.mxu0 0.0
  %69 = vmatprep.subr.mxu0 0.0
  %70 = vmatpush1.msra.mxu0 0.0
  %71 = vmatprep.subr.mxu0 0.0
  %72 = vmatpush1.msra.mxu0 0.0
  %73 = vmatprep.subr.mxu0 0.0
  %74 = vmatpush1.msra.mxu0 0.0
  %75 = vmatprep.subr.mxu0 0.0
  %76 = vmatpush1.msra.mxu0 0.0
  %77 = vmatprep.subr.mxu0 0.0
  %78 = vmatpush1.msra.mxu0 0.0
  %79 = vmatprep.subr.mxu0 0.0
  %80 = vmatpush1.msra.mxu0 0.0
  %81 = vmatprep.subr.mxu0 0.0
  %82 = vmatpush1.msra.mxu0 0.0
  %83 = vmatprep.subr.mxu0 0.0
  %84 = vmatpush1.msra.mxu0 0.0
  %85 = vmatprep.subr.mxu0 0.0
  %86 = vmatpush1.msra.mxu0 0.0
  %87 = vmatprep.subr.mxu0 0.0
  %88 = vmatpush1.msra.mxu0 0.0
  %89 = vmatprep.subr.mxu0 0.0
  %90 = vmatpush1.msra.mxu0 0.0
  %91 = vmatprep.subr.mxu0 0.0
  %92 = vmatpush1.msra.mxu0 0.0
  %93 = vmatprep.subr.mxu0 0.0
  %94 = vmatpush1.msra.mxu0 0.0
  %95 = vmatprep.subr.mxu0 0.0
  %96 = vmatpush1.msra.mxu0 0.0
  %97 = vmatprep.mubr.f32.mxu0 0.0
  %98 = vmatmul.mubr.f32.gmra.mrb[0].mxu0 %v15
  %v99 = vpop.f32.mrb[0].mxu0
  %v100 = vadd.f32 %v32, %v99
  %v101 = vpop.f32.mrb[0].mxu0
  %102 = vdwg.mxu0
  %v103 = vlaneseq
  %v104 = vand.u32 %v103, 127
  %vm105 = vcmp.lt.s32.totalorder %v104, 8
  %v106 = vsel %vm105, %v100, -inf
  %vm107 = vcmask 1040384
  %v108 = vsel %vm107, %v106, -inf
  %109 = vmax.xlane.f32.xlu0 %v108
  %v110 = vpop.xlane.xlu0 %109
  %v111 = vsub.f32 %v100, %v110
  %v112 = vmul.f32 %v111, 1.442695
  %v113 = vpow.pop %v112
  %v114 = vsel %vm105, %v113, 0.0
  %v115 = vsel %vm107, %v114, 0.0
  %116 = vadd.xlane.f32.xlu0 %v115
  %v117 = vpop.xlane.xlu0 %116
  %v118 = vlog2.pop %v117
  %v119 = vmul.f32 %v118, 0.6931472
  %v120 = vsub.f32 %v111, %v119
  %v121 = vsel %vm105, %v120, 0.0
  %122 = vst [vmem:[%s3] sm:$0x1] %v121
  // Predicated region
  $region14: #{gnn_forward.3} parent=0 // pred_check
    _
  $region15: #{gnn_forward.3} parent=0 // pred_check_branch
    %124 = sbr.rel (0) target = $region17
  $region16: #{gnn_forward.3} parent=0 // pred_region
    _
  $region17: #{gnn_forward.3} parent=0 // pred_fallthru
    _
  // Predicated region
  $region18: #{gnn_forward.3} parent=0 // pred_check
    _
  $region19: #{gnn_forward.3} parent=0 // pred_check_branch
    %126 = sbr.rel (0) target = $region21
  $region20: #{gnn_forward.3} parent=0 // pred_region
    _
  $region21: #{gnn_forward.3} parent=0 // pred_fallthru
    _

// kernel: gnn_forward.2
$region0: #{gnn_forward.2}
  #allocation0 [shape = 'u32[]', space=smem, size = 0x4, offset = 0x4, fixed_abs, tag = 'smem constant byte address 0x4 - core index']
  #allocation1 [shape = 'u32[144,128]{1,0:T(1,128)}', space=vmem, size = 0x12000, scoped, tag = 'internal scratch']
  #allocation2 [shape = 'f32[128,128]{1,0:T(8,128)}', space=vmem, size = 0x10000, scoped, tag = 'scratch operand']
  %s0 = inlined_call_operand.vmem [shape: bf16[128,128], index: 0, kind: input, shape index: {}]
  %s1 = inlined_call_operand.vmem [shape: bf16[128,128], index: 1, kind: input, shape index: {}]
  %s2 = inlined_call_operand.vmem [shape: f32[1,128], index: 2, kind: input, shape index: {}]
  %s3 = inlined_call_operand.vmem [shape: f32[1,128], index: 3, kind: input, shape index: {}]
  %s4 = inlined_call_operand.vmem [shape: f32[1,1,128], index: 4, kind: output, shape index: {}]
  %s5 = sld [smem:[#allocation0]]
  $region38: #{gnn_forward.2} parent=0
    _
  %s7 = ssub.s32 1, %s5
  %s8 = scalar_select 0, %s7, %s5
  // Predicated region
  $region2: #{gnn_forward.2} parent=0 // pred_check
    _
  $region3: #{gnn_forward.2} parent=0 // pred_check_branch
    %10 = sbr.rel (0) target = $region5
  $region4: #{gnn_forward.2} parent=0 // pred_region
    _
  $region5: #{gnn_forward.2} parent=0 // pred_fallthru
    _
  // Predicated region
  $region6: #{gnn_forward.2} parent=0 // pred_check
    _
  $region7: #{gnn_forward.2} parent=0 // pred_check_branch
    %12 = sbr.rel (0) target = $region9
  $region8: #{gnn_forward.2} parent=0 // pred_region
    %s13 = sadd.s32 0, 0
    %s14 = smul.u32 16, %s13
    %p15 = scmp.lt.s32.totalorder %s14, 15
    %s16 = scalar_select %p15, %s14, 15
    %s17 = smul.addr %s16, 4
    %s18 = scalar_lea.vmem %s1, %s17
    %s19 = sadd.s32 0, 0
    %s20 = smul.u32 16, %s19
  $region9: #{gnn_forward.2} parent=0 // pred_fallthru
    _
  // Predicated region
  $region10: #{gnn_forward.2} parent=0 // pred_check
    _
  $region11: #{gnn_forward.2} parent=0 // pred_check_branch
    %22 = sbr.rel (0) target = $region13
  $region12: #{gnn_forward.2} parent=0 // pred_region
    %s23 = sadd.s32 0, 0
    %p24 = scmp.lt.s32.totalorder %s23, 0
    %s25 = scalar_select %p24, %s23, 0
    %s26 = scalar_lea.vmem %s2, %s25
    %s27 = sadd.s32 0, 0
  $region13: #{gnn_forward.2} parent=0 // pred_fallthru
    _
  // Predicated region
  $region14: #{gnn_forward.2} parent=0 // pred_check
    _
  $region15: #{gnn_forward.2} parent=0 // pred_check_branch
    %29 = sbr.rel (0) target = $region17
  $region16: #{gnn_forward.2} parent=0 // pred_region
    _
  $region17: #{gnn_forward.2} parent=0 // pred_fallthru
    _
  %s30 = sadd.s32 0, 0
  %s31 = smul.u32 16, %s30
  %p32 = scmp.lt.s32.totalorder %s31, 15
  %s33 = scalar_select %p32, %s31, 15
  %s34 = smul.addr %s33, 4
  %s35 = scalar_lea.vmem %s1, %s34
  %s36 = sadd.s32 0, 0
  %p37 = scmp.lt.s32.totalorder %s36, 0
  %s38 = scalar_select %p37, %s36, 0
  %s39 = scalar_lea.vmem %s2, %s38
  %s40 = sadd.s32 0, 0
  %s41 = smul.u32 16, %s40
  %p42 = scmp.lt.s32.totalorder %s41, 15
  %s43 = scalar_select %p42, %s41, 15
  %s44 = smul.addr %s43, 4
  %s45 = scalar_lea.vmem %s1, %s44
  %s46 = sadd.s32 0, 0
  %s47 = smul.u32 16, %s46
  %s48 = sadd.s32 0, 0
  %p49 = scmp.lt.s32.totalorder %s48, 0
  %s50 = scalar_select %p49, %s48, 0
  %s51 = scalar_lea.vmem %s2, %s50
  %s52 = sadd.s32 0, 0
  %p54 = scmp.eq.s32.totalorder 0, 0
  %p55 = scmp.eq.s32.totalorder 0, 0
  %p56 = pnand %p54, %p55
  %p57 = pneg %p56
  // Predicated region
  $region18: #{gnn_forward.2} parent=0 // pred_check
    _
  $region19: #{gnn_forward.2} parent=0 // pred_check_branch
    %59 = sbr.rel (%p56) target = $region21
  $region20: #{gnn_forward.2} parent=0 // pred_region
    %60 = vst [vmem:[%s4] sm:$0x1] 0.0
  $region21: #{gnn_forward.2} parent=0 // pred_fallthru
    _
  // Predicated region
  $region22: #{gnn_forward.2} parent=0 // pred_check
    %p61 = pneg %p55
  $region23: #{gnn_forward.2} parent=0 // pred_check_branch
    %63 = sbr.rel (%p61) target = $region25
  $region24: #{gnn_forward.2} parent=0 // pred_region
    %64 = vst [vmem:[#allocation2] sm:$0xff] 0.0
    %65 = vst [vmem:[#allocation2 + $0x8] sm:$0xff] 0.0
    %66 = vst [vmem:[#allocation2 + $0x10] sm:$0xff] 0.0
    %67 = vst [vmem:[#allocation2 + $0x18] sm:$0xff] 0.0
    %68 = vst [vmem:[#allocation2 + $0x20] sm:$0xff] 0.0
    %69 = vst [vmem:[#allocation2 + $0x28] sm:$0xff] 0.0
    %70 = vst [vmem:[#allocation2 + $0x30] sm:$0xff] 0.0
    %71 = vst [vmem:[#allocation2 + $0x38] sm:$0xff] 0.0
    %72 = vst [vmem:[#allocation2 + $0x40] sm:$0xff] 0.0
    %73 = vst [vmem:[#allocation2 + $0x48] sm:$0xff] 0.0
    %74 = vst [vmem:[#allocation2 + $0x50] sm:$0xff] 0.0
    %75 = vst [vmem:[#allocation2 + $0x58] sm:$0xff] 0.0
    %76 = vst [vmem:[#allocation2 + $0x60] sm:$0xff] 0.0
    %77 = vst [vmem:[#allocation2 + $0x68] sm:$0xff] 0.0
    %78 = vst [vmem:[#allocation2 + $0x70] sm:$0xff] 0.0
    %79 = vst [vmem:[#allocation2 + $0x78] sm:$0xff] 0.0
  $region25: #{gnn_forward.2} parent=0 // pred_fallthru
    _
  %v80 = vld [vmem:[#allocation2] sm:$0xff]
  %v81 = vld [vmem:[#allocation2 + $0x8] sm:$0xff]
  %v82 = vld [vmem:[#allocation2 + $0x10] sm:$0xff]
  %v83 = vld [vmem:[#allocation2 + $0x18] sm:$0xff]
  %v84 = vld [vmem:[#allocation2 + $0x20] sm:$0xff]
  %v85 = vld [vmem:[#allocation2 + $0x28] sm:$0xff]
  %v86 = vld [vmem:[#allocation2 + $0x30] sm:$0xff]
  %v87 = vld [vmem:[#allocation2 + $0x38] sm:$0xff]
  %v88 = vld [vmem:[#allocation2 + $0x40] sm:$0xff]
  %v89 = vld [vmem:[#allocation2 + $0x48] sm:$0xff]
  %v90 = vld [vmem:[#allocation2 + $0x50] sm:$0xff]
  %v91 = vld [vmem:[#allocation2 + $0x58] sm:$0xff]
  %v92 = vld [vmem:[#allocation2 + $0x60] sm:$0xff]
  %v93 = vld [vmem:[#allocation2 + $0x68] sm:$0xff]
  %v94 = vld [vmem:[#allocation2 + $0x70] sm:$0xff]
  %v95 = vld [vmem:[#allocation2 + $0x78] sm:$0xff]
  %v96 = vld [vmem:[%s45] sm:$0xf]
  %v97 = vld [vmem:[%s45 + $0x4] sm:$0xf]
  %v98 = vld [vmem:[%s45 + $0x8] sm:$0xf]
  %v99 = vld [vmem:[%s45 + $0xc] sm:$0xf]
  %v100 = vld [vmem:[%s45 + $0x10] sm:$0xf]
  %v101 = vld [vmem:[%s45 + $0x14] sm:$0xf]
  %v102 = vld [vmem:[%s45 + $0x18] sm:$0xf]
  %v103 = vld [vmem:[%s45 + $0x1c] sm:$0xf]
  %v104 = vld [vmem:[%s45 + $0x20] sm:$0xf]
  %v105 = vld [vmem:[%s45 + $0x24] sm:$0xf]
  %v106 = vld [vmem:[%s45 + $0x28] sm:$0xf]
  %v107 = vld [vmem:[%s45 + $0x2c] sm:$0xf]
  %v108 = vld [vmem:[%s45 + $0x30] sm:$0xf]
  %v109 = vld [vmem:[%s45 + $0x34] sm:$0xf]
  %v110 = vld [vmem:[%s45 + $0x38] sm:$0xf]
  %v111 = vld [vmem:[%s45 + $0x3c] sm:$0xf]
  %v112 = vld [vmem:[%s0] sm:$0xf]
  %v113 = vld [vmem:[%s0 + $0x4] sm:$0xf]
  %v114 = vld [vmem:[%s0 + $0x8] sm:$0xf]
  %v115 = vld [vmem:[%s0 + $0xc] sm:$0xf]
  %v116 = vld [vmem:[%s0 + $0x10] sm:$0xf]
  %v117 = vld [vmem:[%s0 + $0x14] sm:$0xf]
  %v118 = vld [vmem:[%s0 + $0x18] sm:$0xf]
  %v119 = vld [vmem:[%s0 + $0x1c] sm:$0xf]
  %v120 = vld [vmem:[%s0 + $0x20] sm:$0xf]
  %v121 = vld [vmem:[%s0 + $0x24] sm:$0xf]
  %v122 = vld [vmem:[%s0 + $0x28] sm:$0xf]
  %v123 = vld [vmem:[%s0 + $0x2c] sm:$0xf]
  %v124 = vld [vmem:[%s0 + $0x30] sm:$0xf]
  %v125 = vld [vmem:[%s0 + $0x34] sm:$0xf]
  %v126 = vld [vmem:[%s0 + $0x38] sm:$0xf]
  %v127 = vld [vmem:[%s0 + $0x3c] sm:$0xf]
  %v144 = vunpack.c.l.b16 %v96
  %v145 = vunpack.c.l.b16 %v97
  %v146 = vunpack.c.l.b16 %v98
  %v147 = vunpack.c.l.b16 %v99
  %v148 = vunpack.c.l.b16 %v100
  %v149 = vunpack.c.l.b16 %v101
  %v150 = vunpack.c.l.b16 %v102
  %v151 = vunpack.c.l.b16 %v103
  %v152 = vunpack.c.l.b16 %v104
  %v153 = vunpack.c.l.b16 %v105
  %v154 = vunpack.c.l.b16 %v106
  %v155 = vunpack.c.l.b16 %v107
  %v156 = vunpack.c.l.b16 %v108
  %v157 = vunpack.c.l.b16 %v109
  %v158 = vunpack.c.l.b16 %v110
  %v159 = vunpack.c.l.b16 %v111
  %v160 = vpack.c.b16 %v145, %v144
  %v161 = vpack.c.b16 %v147, %v146
  %v162 = vpack.c.b16 %v149, %v148
  %v163 = vpack.c.b16 %v151, %v150
  %v164 = vpack.c.b16 %v153, %v152
  %v165 = vpack.c.b16 %v155, %v154
  %v166 = vpack.c.b16 %v157, %v156
  %v167 = vpack.c.b16 %v159, %v158
  %v192 = vunpack.c.l.b16 %v112
  %v193 = vunpack.c.l.b16 %v113
  %v194 = vunpack.c.l.b16 %v114
  %v195 = vunpack.c.l.b16 %v115
  %v196 = vunpack.c.l.b16 %v116
  %v197 = vunpack.c.l.b16 %v117
  %v198 = vunpack.c.l.b16 %v118
  %v199 = vunpack.c.l.b16 %v119
  %v200 = vunpack.c.l.b16 %v120
  %v201 = vunpack.c.l.b16 %v121
  %v202 = vunpack.c.l.b16 %v122
  %v203 = vunpack.c.l.b16 %v123
  %v204 = vunpack.c.l.b16 %v124
  %v205 = vunpack.c.l.b16 %v125
  %v206 = vunpack.c.l.b16 %v126
  %v207 = vunpack.c.l.b16 %v127
  %v208 = vpack.c.b16 %v193, %v192
  %v209 = vpack.c.b16 %v195, %v194
  %v210 = vpack.c.b16 %v197, %v196
  %v211 = vpack.c.b16 %v199, %v198
  %v212 = vpack.c.b16 %v201, %v200
  %v213 = vpack.c.b16 %v203, %v202
  %v214 = vpack.c.b16 %v205, %v204
  %v215 = vpack.c.b16 %v207, %v206
  %224 = vmatprep.subr.bf16.mxu0 0
  %225 = vmatpush1.bf16.msra.mxu0 %v208
  %226 = vmatprep.subr.bf16.mxu0 0
  %227 = vmatpush1.bf16.msra.mxu0 %v209
  %228 = vmatprep.subr.bf16.mxu0 0
  %229 = vmatpush1.bf16.msra.mxu0 %v210
  %230 = vmatprep.subr.bf16.mxu0 0
  %231 = vmatpush1.bf16.msra.mxu0 %v211
  %232 = vmatprep.subr.bf16.mxu0 0
  %233 = vmatpush1.bf16.msra.mxu0 %v212
  %234 = vmatprep.subr.bf16.mxu0 0
  %235 = vmatpush1.bf16.msra.mxu0 %v213
  %236 = vmatprep.subr.bf16.mxu0 0
  %237 = vmatpush1.bf16.msra.mxu0 %v214
  %238 = vmatprep.subr.bf16.mxu0 0
  %239 = vmatpush1.bf16.msra.mxu0 %v215
  %240 = vmatprep.subr.bf16.mxu0 0
  %241 = vmatpush1.bf16.msra.mxu0 0
  %242 = vmatprep.subr.bf16.mxu0 0
  %243 = vmatpush1.bf16.msra.mxu0 0
  %244 = vmatprep.subr.bf16.mxu0 0
  %245 = vmatpush1.bf16.msra.mxu0 0
  %246 = vmatprep.subr.bf16.mxu0 0
  %247 = vmatpush1.bf16.msra.mxu0 0
  %248 = vmatprep.subr.bf16.mxu0 0
  %249 = vmatpush1.bf16.msra.mxu0 0
  %250 = vmatprep.subr.bf16.mxu0 0
  %251 = vmatpush1.bf16.msra.mxu0 0
  %252 = vmatprep.subr.bf16.mxu0 0
  %253 = vmatpush1.bf16.msra.mxu0 0
  %254 = vmatprep.subr.bf16.mxu0 0
  %255 = vmatpush1.bf16.msra.mxu0 0
  %256 = vmatprep.mubr.bf16.mxu0 0
  %257 = vmatmul.mubr.bf16.gmra.mrb[0].mxu0 %v160
  %v258 = vpop.f32.mrb[0].mxu0
  %v259 = vadd.f32 0.0, %v258
  %v260 = vpop.f32.mrb[0].mxu0
  %v261 = vpop.f32.mrb[0].mxu0
  %v262 = vadd.f32 0.0, %v261
  %v263 = vpop.f32.mrb[0].mxu0
  %264 = vmatprep.mubr.bf16.mxu0 0
  %265 = vmatmul.mubr.bf16.gmra.mrb[0].mxu0 %v161
  %v266 = vpop.f32.mrb[0].mxu0
  %v267 = vadd.f32 0.0, %v266
  %v268 = vpop.f32.mrb[0].mxu0
  %v269 = vpop.f32.mrb[0].mxu0
  %v270 = vadd.f32 0.0, %v269
  %v271 = vpop.f32.mrb[0].mxu0
  %272 = vmatprep.mubr.bf16.mxu0 0
  %273 = vmatmul.mubr.bf16.gmra.mrb[0].mxu0 %v162
  %v274 = vpop.f32.mrb[0].mxu0
  %v275 = vadd.f32 0.0, %v274
  %v276 = vpop.f32.mrb[0].mxu0
  %v277 = vpop.f32.mrb[0].mxu0
  %v278 = vadd.f32 0.0, %v277
  %v279 = vpop.f32.mrb[0].mxu0
  %280 = vmatprep.mubr.bf16.mxu0 0
  %281 = vmatmul.mubr.bf16.gmra.mrb[0].mxu0 %v163
  %v282 = vpop.f32.mrb[0].mxu0
  %v283 = vadd.f32 0.0, %v282
  %v284 = vpop.f32.mrb[0].mxu0
  %v285 = vpop.f32.mrb[0].mxu0
  %v286 = vadd.f32 0.0, %v285
  %v287 = vpop.f32.mrb[0].mxu0
  %288 = vmatprep.mubr.bf16.mxu0 0
  %289 = vmatmul.mubr.bf16.gmra.mrb[0].mxu0 %v164
  %v290 = vpop.f32.mrb[0].mxu0
  %v291 = vadd.f32 0.0, %v290
  %v292 = vpop.f32.mrb[0].mxu0
  %v293 = vpop.f32.mrb[0].mxu0
  %v294 = vadd.f32 0.0, %v293
  %v295 = vpop.f32.mrb[0].mxu0
  %296 = vmatprep.mubr.bf16.mxu0 0
  %297 = vmatmul.mubr.bf16.gmra.mrb[0].mxu0 %v165
  %v298 = vpop.f32.mrb[0].mxu0
  %v299 = vadd.f32 0.0, %v298
  %v300 = vpop.f32.mrb[0].mxu0
  %v301 = vpop.f32.mrb[0].mxu0
  %v302 = vadd.f32 0.0, %v301
  %v303 = vpop.f32.mrb[0].mxu0
  %304 = vmatprep.mubr.bf16.mxu0 0
  %305 = vmatmul.mubr.bf16.gmra.mrb[0].mxu0 %v166
  %v306 = vpop.f32.mrb[0].mxu0
  %v307 = vadd.f32 0.0, %v306
  %v308 = vpop.f32.mrb[0].mxu0
  %v309 = vpop.f32.mrb[0].mxu0
  %v310 = vadd.f32 0.0, %v309
  %v311 = vpop.f32.mrb[0].mxu0
  %312 = vmatprep.mubr.bf16.mxu0 0
  %313 = vmatmul.mubr.bf16.gmra.mrb[0].mxu0 %v167
  %v314 = vpop.f32.mrb[0].mxu0
  %v315 = vadd.f32 0.0, %v314
  %v316 = vpop.f32.mrb[0].mxu0
  %v317 = vpop.f32.mrb[0].mxu0
  %v318 = vadd.f32 0.0, %v317
  %v319 = vpop.f32.mrb[0].mxu0
  %320 = vdwg.mxu0
  %v321 = vadd.f32 %v80, %v259
  %v322 = vadd.f32 %v81, %v262
  %v323 = vadd.f32 %v82, %v267
  %v324 = vadd.f32 %v83, %v270
  %v325 = vadd.f32 %v84, %v275
  %v326 = vadd.f32 %v85, %v278
  %v327 = vadd.f32 %v86, %v283
  %v328 = vadd.f32 %v87, %v286
  %v329 = vadd.f32 %v88, %v291
  %v330 = vadd.f32 %v89, %v294
  %v331 = vadd.f32 %v90, %v299
  %v332 = vadd.f32 %v91, %v302
  %v333 = vadd.f32 %v92, %v307
  %v334 = vadd.f32 %v93, %v310
  %v335 = vadd.f32 %v94, %v315
  %v336 = vadd.f32 %v95, %v318
  %337 = vst [vmem:[#allocation2] sm:$0xff] %v321
  %338 = vst [vmem:[#allocation2 + $0x8] sm:$0xff] %v322
  %339 = vst [vmem:[#allocation2 + $0x10] sm:$0xff] %v323
  %340 = vst [vmem:[#allocation2 + $0x18] sm:$0xff] %v324
  %341 = vst [vmem:[#allocation2 + $0x20] sm:$0xff] %v325
  %342 = vst [vmem:[#allocation2 + $0x28] sm:$0xff] %v326
  %343 = vst [vmem:[#allocation2 + $0x30] sm:$0xff] %v327
  %344 = vst [vmem:[#allocation2 + $0x38] sm:$0xff] %v328
  %345 = vst [vmem:[#allocation2 + $0x40] sm:$0xff] %v329
  %346 = vst [vmem:[#allocation2 + $0x48] sm:$0xff] %v330
  %347 = vst [vmem:[#allocation2 + $0x50] sm:$0xff] %v331
  %348 = vst [vmem:[#allocation2 + $0x58] sm:$0xff] %v332
  %349 = vst [vmem:[#allocation2 + $0x60] sm:$0xff] %v333
  %350 = vst [vmem:[#allocation2 + $0x68] sm:$0xff] %v334
  %351 = vst [vmem:[#allocation2 + $0x70] sm:$0xff] %v335
  %352 = vst [vmem:[#allocation2 + $0x78] sm:$0xff] %v336
  // Predicated region
  $region26: #{gnn_forward.2} parent=0 // pred_check
    %p353 = pneg %p55
  $region27: #{gnn_forward.2} parent=0 // pred_check_branch
    %355 = sbr.rel (%p353) target = $region29
  $region28: #{gnn_forward.2} parent=0 // pred_region
    %v356 = vld [vmem:[#allocation2] sm:$0xff]
    %v357 = vld [vmem:[#allocation2 + $0x8] sm:$0xff]
    %v358 = vld [vmem:[#allocation2 + $0x10] sm:$0xff]
    %v359 = vld [vmem:[#allocation2 + $0x18] sm:$0xff]
    %v360 = vld [vmem:[#allocation2 + $0x20] sm:$0xff]
    %v361 = vld [vmem:[#allocation2 + $0x28] sm:$0xff]
    %v362 = vld [vmem:[#allocation2 + $0x30] sm:$0xff]
    %v363 = vld [vmem:[#allocation2 + $0x38] sm:$0xff]
    %v364 = vld [vmem:[#allocation2 + $0x40] sm:$0xff]
    %v365 = vld [vmem:[#allocation2 + $0x48] sm:$0xff]
    %v366 = vld [vmem:[#allocation2 + $0x50] sm:$0xff]
    %v367 = vld [vmem:[#allocation2 + $0x58] sm:$0xff]
    %v368 = vld [vmem:[#allocation2 + $0x60] sm:$0xff]
    %v369 = vld [vmem:[#allocation2 + $0x68] sm:$0xff]
    %v370 = vld [vmem:[#allocation2 + $0x70] sm:$0xff]
    %v371 = vld [vmem:[#allocation2 + $0x78] sm:$0xff]
    %v372 = vld [vmem:[%s3] sm:$0x1]
    %v374 = vlaneseq
    %v375 = vshrl.u32 %v374, 7
    %v376 = vsub.s32 0, %v375
    %v377 = vrot.slane %v372, %v376
    %v379 = vadd.f32 %v356, %v377
    %v380 = vadd.f32 %v357, %v377
    %v381 = vadd.f32 %v358, %v377
    %v382 = vadd.f32 %v359, %v377
    %v383 = vadd.f32 %v360, %v377
    %v384 = vadd.f32 %v361, %v377
    %v385 = vadd.f32 %v362, %v377
    %v386 = vadd.f32 %v363, %v377
    %v387 = vadd.f32 %v364, %v377
    %v388 = vadd.f32 %v365, %v377
    %v389 = vadd.f32 %v366, %v377
    %v390 = vadd.f32 %v367, %v377
    %v391 = vadd.f32 %v368, %v377
    %v392 = vadd.f32 %v369, %v377
    %v393 = vadd.f32 %v370, %v377
    %v394 = vadd.f32 %v371, %v377
    %v395 = vmax.f32 %v379, 0.0
    %v396 = vmax.f32 %v380, 0.0
    %v397 = vmax.f32 %v381, 0.0
    %v398 = vmax.f32 %v382, 0.0
    %v399 = vmax.f32 %v383, 0.0
    %v400 = vmax.f32 %v384, 0.0
    %v401 = vmax.f32 %v385, 0.0
    %v402 = vmax.f32 %v386, 0.0
    %v403 = vmax.f32 %v387, 0.0
    %v404 = vmax.f32 %v388, 0.0
    %v405 = vmax.f32 %v389, 0.0
    %v406 = vmax.f32 %v390, 0.0
    %v407 = vmax.f32 %v391, 0.0
    %v408 = vmax.f32 %v392, 0.0
    %v409 = vmax.f32 %v393, 0.0
    %v410 = vmax.f32 %v394, 0.0
    %v411 = vld [vmem:[%s4] sm:$0x1]
    %v412 = vld [vmem:[%s51] sm:$0x1]
    %413 = vmatprep.subr.mxu0 0.0
    %414 = vmatpush1.msra.mxu0 %v395
    %415 = vmatprep.subr.mxu0 0.0
    %416 = vmatpush1.msra.mxu0 %v396
    %417 = vmatprep.subr.mxu0 0.0
    %418 = vmatpush1.msra.mxu0 %v397
    %419 = vmatprep.subr.mxu0 0.0
    %420 = vmatpush1.msra.mxu0 %v398
    %421 = vmatprep.subr.mxu0 0.0
    %422 = vmatpush1.msra.mxu0 %v399
    %423 = vmatprep.subr.mxu0 0.0
    %424 = vmatpush1.msra.mxu0 %v400
    %425 = vmatprep.subr.mxu0 0.0
    %426 = vmatpush1.msra.mxu0 %v401
    %427 = vmatprep.subr.mxu0 0.0
    %428 = vmatpush1.msra.mxu0 %v402
    %429 = vmatprep.subr.mxu0 0.0
    %430 = vmatpush1.msra.mxu0 %v403
    %431 = vmatprep.subr.mxu0 0.0
    %432 = vmatpush1.msra.mxu0 %v404
    %433 = vmatprep.subr.mxu0 0.0
    %434 = vmatpush1.msra.mxu0 %v405
    %435 = vmatprep.subr.mxu0 0.0
    %436 = vmatpush1.msra.mxu0 %v406
    %437 = vmatprep.subr.mxu0 0.0
    %438 = vmatpush1.msra.mxu0 %v407
    %439 = vmatprep.subr.mxu0 0.0
    %440 = vmatpush1.msra.mxu0 %v408
    %441 = vmatprep.subr.mxu0 0.0
    %442 = vmatpush1.msra.mxu0 %v409
    %443 = vmatprep.subr.mxu0 0.0
    %444 = vmatpush1.msra.mxu0 %v410
    %445 = vmatprep.subr.mxu0 0.0
    %446 = vmatpush1.msra.mxu0 0.0
    %447 = vmatprep.subr.mxu0 0.0
    %448 = vmatpush1.msra.mxu0 0.0
    %449 = vmatprep.subr.mxu0 0.0
    %450 = vmatpush1.msra.mxu0 0.0
    %451 = vmatprep.subr.mxu0 0.0
    %452 = vmatpush1.msra.mxu0 0.0
    %453 = vmatprep.subr.mxu0 0.0
    %454 = vmatpush1.msra.mxu0 0.0
    %455 = vmatprep.subr.mxu0 0.0
    %456 = vmatpush1.msra.mxu0 0.0
    %457 = vmatprep.subr.mxu0 0.0
    %458 = vmatpush1.msra.mxu0 0.0
    %459 = vmatprep.subr.mxu0 0.0
    %460 = vmatpush1.msra.mxu0 0.0
    %461 = vmatprep.subr.mxu0 0.0
    %462 = vmatpush1.msra.mxu0 0.0
    %463 = vmatprep.subr.mxu0 0.0
    %464 = vmatpush1.msra.mxu0 0.0
    %465 = vmatprep.subr.mxu0 0.0
    %466 = vmatpush1.msra.mxu0 0.0
    %467 = vmatprep.subr.mxu0 0.0
    %468 = vmatpush1.msra.mxu0 0.0
    %469 = vmatprep.subr.mxu0 0.0
    %470 = vmatpush1.msra.mxu0 0.0
    %471 = vmatprep.subr.mxu0 0.0
    %472 = vmatpush1.msra.mxu0 0.0
    %473 = vmatprep.subr.mxu0 0.0
    %474 = vmatpush1.msra.mxu0 0.0
    %475 = vmatprep.subr.mxu0 0.0
    %476 = vmatpush1.msra.mxu0 0.0
    %477 = vmatprep.mubr.f32.mxu0 0.0
    %478 = vmatmul.mubr.f32.gmra.mrb[0].mxu0 %v412
    %v479 = vpop.f32.mrb[0].mxu0
    %v480 = vadd.f32 0.0, %v479
    %v481 = vpop.f32.mrb[0].mxu0
    %482 = vdwg.mxu0
    %v483 = vadd.f32 %v411, %v480
    %484 = vst [vmem:[%s4] sm:$0x1] %v483
  $region29: #{gnn_forward.2} parent=0 // pred_fallthru
    _
  // Predicated region
  $region30: #{gnn_forward.2} parent=0 // pred_check
    _
  $region31: #{gnn_forward.2} parent=0 // pred_check_branch
    %486 = sbr.rel (0) target = $region33
  $region32: #{gnn_forward.2} parent=0 // pred_region
    _
  $region33: #{gnn_forward.2} parent=0 // pred_fallthru
    _
  // Predicated region
  $region34: #{gnn_forward.2} parent=0 // pred_check
    _
  $region35: #{gnn_forward.2} parent=0 // pred_check_branch
    %488 = sbr.rel (0) target = $region37
  $region36: #{gnn_forward.2} parent=0 // pred_region
    _
  $region37: #{gnn_forward.2} parent=0 // pred_fallthru
    _

</llo_original>
